<compile_context>
chip_gen: v7x
topology: tpu7x:2x2x1
jax: 0.10.0
libtpu: 0.0.40
codegen_flags: <defaults>
</compile_context>

<pallas_src>
import functools
import math

import jax
import jax.numpy as jnp
from jax.experimental import pallas as pl
from jax.experimental.pallas import tpu as pltpu


_ACC_BUDGET_BYTES = 9 * 2**20     # max f32 accumulator per conv tile
_FC1_TK = 7936                    # fc1 K tile: multiple of 128 (lanes) and 8 (sublanes)


@functools.lru_cache(maxsize=None)
def _vmem_limit():
    """Scoped-VMEM limit derived from the actual chip (v7x has only 64 MiB)."""
    try:
        cap = int(pltpu.get_tpu_info().vmem_capacity_bytes)
    except Exception:
        cap = 64 * 2**20
    return int(min(cap * 3 // 4, 100 * 2**20))


def _pick_rows(h, w, c2, even):
    """Largest row-tile dividing `h` whose f32 accumulator fits the budget."""
    best = 2 if even else 1
    for r in range(1, h + 1):
        if h % r:
            continue
        if even and r % 2:
            continue
        if r * w * c2 * 4 <= _ACC_BUDGET_BYTES:
            best = r
    return best


# ----------------------------------------------------------------------------
# Shared epilogue: Max-Feature-Map, optional fused 2x2 max-pool, single store.
# ----------------------------------------------------------------------------
def _mfm_pool_write(acc, cout, rows, width, pool, o_ref):
    y = jnp.maximum(acc[:, :cout], acc[:, cout:]).reshape(rows, width, cout)
    if pool:
        y = jnp.maximum(y[:, 0::2, :], y[:, 1::2, :])   # pool along W (sublane)
        y = jnp.maximum(y[0::2], y[1::2])               # pool along H (leading)
    o_ref[0] = y.astype(o_ref.dtype)


# ----------------------------------------------------------------------------
# Pointwise conv (+ MFM + optional 2x2 max-pool).  Used for all 1x1 convs and
# for layer1's 5x5 conv after a wrapper-side im2col (Cin -> 25).
# ----------------------------------------------------------------------------
def _pconv_kernel(x_ref, w_ref, b_ref, o_ref, *, cout, pool):
    _, rows, width, cin = x_ref.shape
    x = x_ref[0].reshape(rows * width, cin)
    acc = jnp.dot(x, w_ref[...], preferred_element_type=jnp.float32)
    acc = acc + b_ref[...]
    _mfm_pool_write(acc, cout, rows, width, pool, o_ref)


def pconv_mfm(x, w, b, *, pool):
    # x: (N, H, W, Cin) bf16 ; w: (Cin, 2*Cout) ; b: (2*Cout,) f32
    x = x.astype(jnp.bfloat16)
    n, h, wdt, cin = x.shape
    c2 = w.shape[1]
    cout = c2 // 2
    rows = _pick_rows(h, wdt, c2, even=pool)
    nb = h // rows
    ho, wo = (h // 2, wdt // 2) if pool else (h, wdt)
    ro = rows // 2 if pool else rows
    kernel = functools.partial(_pconv_kernel, cout=cout, pool=pool)
    return pl.pallas_call(
        kernel,
        out_shape=jax.ShapeDtypeStruct((n, ho, wo, cout), jnp.bfloat16),
        grid=(n, nb),
        in_specs=[pl.BlockSpec((1, rows, wdt, cin), lambda ni, i: (ni, i, 0, 0)),
                  pl.BlockSpec((cin, c2), lambda ni, i: (0, 0)),
                  pl.BlockSpec((1, c2), lambda ni, i: (0, 0))],
        out_specs=pl.BlockSpec((1, ro, wo, cout), lambda ni, i: (ni, i, 0, 0)),
        compiler_params=pltpu.CompilerParams(
            dimension_semantics=("parallel", "parallel"),
            vmem_limit_bytes=_vmem_limit()),
    )(x, w.astype(jnp.bfloat16), b.reshape(1, c2).astype(jnp.float32))


# ----------------------------------------------------------------------------
# KxK conv (stride 1, "same" zero padding) via per-tap batched matmuls, fused
# with MFM and an optional 2x2 max-pool.  The wrapper materializes compact
# overlapping row tiles (only K-1 halo rows extra) with W/H zero padding.
# ----------------------------------------------------------------------------
def _tapconv_kernel(x_ref, w_ref, b_ref, o_ref, *, K, cout, pool):
    _, rin, wp, cin = x_ref.shape
    c2 = 2 * cout
    rows = rin - (K - 1)
    width = wp - (K - 1)
    xx = x_ref[0]                                   # (rows+K-1, W+K-1, Cin)
    w = w_ref[...]                                  # (K, K, Cin, 2*Cout)
    acc = jnp.zeros((rows * width, c2), jnp.float32)
    for kh in range(K):
        for kw in range(K):
            patch = xx[kh:kh + rows, kw:kw + width, :].reshape(rows * width, cin)
            acc = acc + jnp.dot(patch, w[kh, kw],
                                preferred_element_type=jnp.float32)
    acc = acc + b_ref[...]
    _mfm_pool_write(acc, cout, rows, width, pool, o_ref)


def tapconv_mfm(x, w, b, *, pool):
    # x: (N, H, W, Cin) bf16 ; w: (K, K, Cin, 2*Cout) ; b: (2*Cout,) f32
    x = x.astype(jnp.bfloat16)
    n, h, wdt, cin = x.shape
    K = w.shape[0]
    c2 = w.shape[3]
    cout = c2 // 2
    pad = (K - 1) // 2
    rows = _pick_rows(h, wdt, c2, even=pool)
    nb = h // rows
    rows_in = rows + K - 1
    wp = wdt + 2 * pad
    # zero-pad H/W once, then stack overlapping row tiles (K-1 halo rows each).
    xpad = jnp.pad(x, ((0, 0), (pad, pad), (pad, pad), (0, 0)))
    xt = jnp.stack([xpad[:, i * rows: i * rows + rows_in] for i in range(nb)],
                   axis=1).reshape(n * nb, rows_in, wp, cin)
    ho, wo = (h // 2, wdt // 2) if pool else (h, wdt)
    ro = rows // 2 if pool else rows
    kernel = functools.partial(_tapconv_kernel, K=K, cout=cout, pool=pool)
    return pl.pallas_call(
        kernel,
        out_shape=jax.ShapeDtypeStruct((n, ho, wo, cout), jnp.bfloat16),
        grid=(n, nb),
        in_specs=[pl.BlockSpec((1, rows_in, wp, cin),
                               lambda ni, i: (ni * nb + i, 0, 0, 0)),
                  pl.BlockSpec((K, K, cin, c2), lambda ni, i: (0, 0, 0, 0)),
                  pl.BlockSpec((1, c2), lambda ni, i: (0, 0))],
        out_specs=pl.BlockSpec((1, ro, wo, cout), lambda ni, i: (ni, i, 0, 0)),
        compiler_params=pltpu.CompilerParams(
            dimension_semantics=("parallel", "parallel"),
            vmem_limit_bytes=_vmem_limit()),
    )(xt, w.astype(jnp.bfloat16), b.reshape(1, c2).astype(jnp.float32))


# ----------------------------------------------------------------------------
# fc1 (Linear + Dropout(eval) + MFM + BatchNorm1d(eval)) fused with
# AngleLinear.forward (training branch returns clamp(cos_theta) * ||x||).
# ----------------------------------------------------------------------------
def _fc1_angle_kernel(x_ref, w_ref, b_ref, s_ref, t_ref, ww_ref, wl_ref,
                      o_ref, acc_ref):
    k = pl.program_id(0)

    @pl.when(k == 0)
    def _init():
        acc_ref[...] = jnp.zeros_like(acc_ref)

    acc_ref[...] += jnp.dot(x_ref[...], w_ref[...],
                            preferred_element_type=jnp.float32)

    @pl.when(k == pl.num_programs(0) - 1)
    def _finalize():
        # Dropout(p=0.75) is the identity in eval mode.
        z = acc_ref[...] + b_ref[...]                       # (N, 2*Cout)
        half = z.shape[-1] // 2
        y = jnp.maximum(z[:, :half], z[:, half:])           # Max-Feature-Map
        y = y * s_ref[...] + t_ref[...]                     # BatchNorm1d (eval)
        xlen = jnp.sqrt(jnp.sum(y * y, axis=1, keepdims=True))
        cos = jnp.dot(y, ww_ref[...], preferred_element_type=jnp.float32)
        cos = jnp.clip(cos / xlen / wl_ref[...], -1.0, 1.0)
        o_ref[...] = (cos * xlen).astype(o_ref.dtype)       # psi_theta not returned


def _pad_fc1_weight(w):
    kf = w.shape[0]
    kp = pl.cdiv(kf, _FC1_TK) * _FC1_TK
    return jnp.pad(w.astype(jnp.bfloat16), ((0, kp - kf), (0, 0)))


def fc1_angle(x, w_padded, b, bn_scale, bn_shift, ww, wlen):
    n, kf = x.shape
    kp, c2 = w_padded.shape
    cout = c2 // 2
    ncls = ww.shape[1]
    xp = jnp.pad(x.astype(jnp.bfloat16), ((0, 0), (0, kp - kf)))
    return pl.pallas_call(
        _fc1_angle_kernel,
        out_shape=jax.ShapeDtypeStruct((n, ncls), jnp.float32),
        grid=(kp // _FC1_TK,),
        in_specs=[pl.BlockSpec((n, _FC1_TK), lambda k: (0, k)),
                  pl.BlockSpec((_FC1_TK, c2), lambda k: (k, 0)),
                  pl.BlockSpec((1, c2), lambda k: (0, 0)),
                  pl.BlockSpec((1, cout), lambda k: (0, 0)),
                  pl.BlockSpec((1, cout), lambda k: (0, 0)),
                  pl.BlockSpec((cout, ncls), lambda k: (0, 0)),
                  pl.BlockSpec((1, ncls), lambda k: (0, 0))],
        out_specs=pl.BlockSpec((n, ncls), lambda k: (0, 0)),
        scratch_shapes=[pltpu.VMEM((n, c2), jnp.float32)],
        compiler_params=pltpu.CompilerParams(
            dimension_semantics=("arbitrary",),
            vmem_limit_bytes=_vmem_limit()),
    )(xp, w_padded, b.reshape(1, c2).astype(jnp.float32),
      bn_scale.reshape(1, cout).astype(jnp.float32),
      bn_shift.reshape(1, cout).astype(jnp.float32),
      ww.astype(jnp.float32), wlen.reshape(1, ncls).astype(jnp.float32))


# ----------------------------------------------------------------------------
# Wrapper-side glue (tiny XLA ops): im2col for layer1, eval-BN folding.
# ----------------------------------------------------------------------------
def _im2col_k(x, K):
    # x: (N, H, W, 1) -> (N, H, W, K*K), kh-major/kw-minor tap order.
    n, h, w, _ = x.shape
    p = (K - 1) // 2
    xp = jnp.pad(x, ((0, 0), (p, p), (p, p), (0, 0)))
    cols = [xp[:, kh:kh + h, kw:kw + w, 0] for kh in range(K) for kw in range(K)]
    return jnp.stack(cols, axis=-1)


def _fold_bn_into_1x1(w, b, gamma, beta, mean, var, eps=1e-5):
    # conv1x1(scale*x + shift) == conv1x1(x; w*scale) + (shift @ w + b)  (exact, eval mode)
    scale = gamma * jax.lax.rsqrt(var + eps)
    shift = beta - mean * scale
    wf = w.reshape(w.shape[2], w.shape[3]).astype(jnp.float32)   # (Cin, 2*Cout)
    return wf * scale[:, None], b + jnp.dot(shift, wf)


# ----------------------------------------------------------------------------
# Parameter init (deterministic; shapes follow LCNN.__init__ / init_weight).
# ----------------------------------------------------------------------------
def init_lcnn_params(key, c_s=(32, 48, 64, 32, 32, 80), num_classes=2):
    conv_defs = {
        'l1':   (5, 1,       2 * c_s[0]),
        'l2a':  (1, c_s[0],  2 * c_s[0]),
        'l2b':  (3, c_s[0],  2 * c_s[1]),
        'l3a':  (1, c_s[1],  2 * c_s[1]),
        'l3b':  (3, c_s[1],  2 * c_s[2]),
        'l4a1': (1, c_s[2],  2 * c_s[2]),
        'l4b1': (3, c_s[2],  2 * c_s[3]),
        'l4a2': (1, c_s[3],  2 * c_s[3]),
        'l4b2': (3, c_s[3],  2 * c_s[4]),
    }
    keys = jax.random.split(key, len(conv_defs) + 2)
    params = {}
    for (name, (k, cin, cout2)), kk in zip(conv_defs.items(), keys):
        std = math.sqrt(2.0 / (cin * k * k))                 # kaiming_normal_(relu)
        w = jax.random.normal(kk, (k, k, cin, cout2), jnp.float32) * std
        params[name] = (w, jnp.zeros((cout2,), jnp.float32))

    def bn(c):  # gamma=1, beta=0; eval running stats mean=0, var=1
        return (jnp.ones((c,), jnp.float32), jnp.zeros((c,), jnp.float32),
                jnp.zeros((c,), jnp.float32), jnp.ones((c,), jnp.float32))

    params['bn2'] = bn(c_s[1])
    params['bn4'] = bn(c_s[3])
    params['bn_fc'] = bn(c_s[5])

    kin, kout = 53 * 37 * c_s[4], 2 * c_s[5]
    std = math.sqrt(2.0 / (kin + kout))                      # xavier_normal_
    fc1_w = jax.random.normal(keys[-2], (kin, kout), jnp.float32) * std
    # stored bf16 and K-padded to the fc1 tile so the ~20 MB weight is never
    # copied / re-padded at runtime (pad rows are zero, contribute nothing).
    params['fc1_w'] = _pad_fc1_weight(fc1_w)
    params['fc1_b'] = jnp.zeros((kout,), jnp.float32)
    params['fc2_w'] = jax.random.uniform(keys[-1], (c_s[5], num_classes),
                                         jnp.float32, -1.0, 1.0)
    return params


# ----------------------------------------------------------------------------
# Full forward pass.
# ----------------------------------------------------------------------------
def lcnn_forward(params, x_nchw):
    eps = 1e-5
    x = jnp.transpose(x_nchw, (0, 2, 3, 1)).astype(jnp.bfloat16)   # NCHW -> NHWC

    # layer1: 5x5 conv (Cin=1) as a 25-wide matmul (wrapper im2col) + MFM + pool
    w1, b1 = params['l1']
    h = pconv_mfm(_im2col_k(x, 5), w1.reshape(25, -1), b1, pool=True)

    # layer2: group(32,48) + pool ; its trailing BatchNorm (bn2) is folded below
    w, b = params['l2a']
    h = pconv_mfm(h, w.reshape(w.shape[2], w.shape[3]), b, pool=False)
    w, b = params['l2b']
    h = tapconv_mfm(h, w, b, pool=True)                            # (N, 212, 148, 48)

    # layer3: group(48,64) + pool ; bn2 (eval affine) folded into the 1x1 conv
    w, b = _fold_bn_into_1x1(*params['l3a'], *params['bn2'], eps=eps)
    h = pconv_mfm(h, w, b, pool=False)
    w, b = params['l3b']
    h = tapconv_mfm(h, w, b, pool=True)                            # (N, 106, 74, 64)

    # layer4: group(64,32) + bn4 + group(32,32) + pool ; bn4 folded into l4a2
    w, b = params['l4a1']
    h = pconv_mfm(h, w.reshape(w.shape[2], w.shape[3]), b, pool=False)
    w, b = params['l4b1']
    h = tapconv_mfm(h, w, b, pool=False)                           # (N, 106, 74, 32)
    w, b = _fold_bn_into_1x1(*params['l4a2'], *params['bn4'], eps=eps)
    h = pconv_mfm(h, w, b, pool=False)
    w, b = params['l4b2']
    h = tapconv_mfm(h, w, b, pool=True)                            # (N, 53, 37, 32)

    # x.view(-1, 53*37*C): PyTorch flattens in NCHW (C, H, W) order; the
    # activation here is tiny (0.25 MB) so the transpose is negligible.
    n = h.shape[0]
    flat = jnp.transpose(h, (0, 3, 1, 2)).reshape(n, -1)           # (N, 62752)

    # fc1 + MFM + BatchNorm1d(eval) fused with AngleLinear.forward
    g, be, m, v = params['bn_fc']
    bn_scale = g * jax.lax.rsqrt(v + eps)
    bn_shift = be - m * bn_scale
    w2 = params['fc2_w'].astype(jnp.float32)
    colnorm = jnp.sqrt(jnp.sum(w2 * w2, axis=0, keepdims=True))
    # torch renorm(2, 1, 1e-5).mul(1e5): columns with norm > 1e-5 become unit norm
    ww = w2 * jnp.where(colnorm > 1e-5, 1.0 / colnorm, 1e5)
    wlen = jnp.sqrt(jnp.sum(ww * ww, axis=0, keepdims=True))
    return fc1_angle(flat, params['fc1_w'], params['fc1_b'],
                     bn_scale, bn_shift, ww, wlen)                 # (N, 2)


# ----------------------------------------------------------------------------
# Small self-checks against pure-JAX references (bf16 operands, f32 accum).
# ----------------------------------------------------------------------------
def _check_kernels():
    key = jax.random.PRNGKey(42)
    k1, k2, k3, k4 = jax.random.split(key, 4)

    # pointwise conv + MFM (+ fused pool)
    x = jax.random.normal(k1, (1, 16, 16, 8), jnp.float32).astype(jnp.bfloat16)
    w = jax.random.normal(k2, (8, 8), jnp.float32)
    b = jnp.arange(8, dtype=jnp.float32) * 0.1
    z = jnp.dot(x.reshape(-1, 8), w.astype(jnp.bfloat16),
                preferred_element_type=jnp.float32) + b
    ref = jnp.maximum(z[:, :4], z[:, 4:]).reshape(1, 16, 16, 4)
    got = pconv_mfm(x, w, b, pool=False)
    assert jnp.allclose(got.astype(jnp.float32), ref, atol=0.1, rtol=0.05), "pconv"
    ref_p = jnp.maximum(ref[:, :, 0::2, :], ref[:, :, 1::2, :])
    ref_p = jnp.maximum(ref_p[:, 0::2], ref_p[:, 1::2])
    got_p = pconv_mfm(x, w, b, pool=True)
    assert jnp.allclose(got_p.astype(jnp.float32), ref_p, atol=0.1, rtol=0.05), "pconv pool"

    # 3x3 conv + MFM + fused pool
    wc = jax.random.normal(k3, (3, 3, 8, 8), jnp.float32)
    wc_q = wc.astype(jnp.bfloat16).astype(jnp.float32)
    rc = jax.lax.conv_general_dilated(
        x.astype(jnp.float32), wc_q, (1, 1), ((1, 1), (1, 1)),
        dimension_numbers=("NHWC", "HWIO", "NHWC")) + b
    rc = jnp.maximum(rc[..., :4], rc[..., 4:])
    rc = jnp.maximum(rc[:, :, 0::2, :], rc[:, :, 1::2, :])
    rc = jnp.maximum(rc[:, 0::2], rc[:, 1::2])
    got_c = tapconv_mfm(x, wc, b, pool=True)
    assert jnp.allclose(got_c.astype(jnp.float32), rc, atol=0.15, rtol=0.05), "tapconv"

    # fc1 + MFM + BN + AngleLinear
    kf = 512
    xf = jax.random.normal(k4, (2, kf), jnp.float32).astype(jnp.bfloat16)
    wf = jax.random.normal(k1, (kf, 16), jnp.float32)
    bf = jnp.arange(16, dtype=jnp.float32) * 0.01
    s = jnp.full((8,), 1.1, jnp.float32)
    t = jnp.full((8,), 0.2, jnp.float32)
    w2 = jax.random.normal(k2, (8, 3), jnp.float32)
    cn = jnp.sqrt(jnp.sum(w2 * w2, axis=0, keepdims=True))
    ww = w2 * jnp.where(cn > 1e-5, 1.0 / cn, 1e5)
    wl = jnp.sqrt(jnp.sum(ww * ww, axis=0, keepdims=True))
    got_f = fc1_angle(xf, _pad_fc1_weight(wf), bf, s, t, ww, wl)
    zf = jnp.dot(xf, wf.astype(jnp.bfloat16), preferred_element_type=jnp.float32) + bf
    yf = jnp.maximum(zf[:, :8], zf[:, 8:]) * s + t
    xl = jnp.sqrt(jnp.sum(yf * yf, axis=1, keepdims=True))
    ref_f = jnp.clip(jnp.dot(yf, ww) / xl / wl, -1.0, 1.0) * xl
    assert jnp.allclose(got_f, ref_f, atol=2e-2, rtol=2e-2), "fc1_angle"


if __name__ == "__main__":
    _check_kernels()

    key = jax.random.PRNGKey(0)
    kx, kp = jax.random.split(key)
    # Smallest spatial size consistent with the hard-coded view(-1, 53*37*C):
    # four stride-2 max-pools: 848 -> 424 -> 212 -> 106 -> 53 ; 592 -> ... -> 37.
    x = jax.random.normal(kx, (2, 1, 848, 592), jnp.float32)   # NCHW, like PyTorch
    params = init_lcnn_params(kp)

    forward = jax.jit(lcnn_forward)
    out = jax.block_until_ready(forward(params, x))
    assert out.shape == (2, 2) and bool(jnp.all(jnp.isfinite(out)))
    print("KERNEL_OK")
</pallas_src>

<mosaic_0001>
module attributes {stable_mosaic.version = 11 : i64} {
  func.func @_pconv_kernel(%arg0: i32, %arg1: i32, %arg2: memref<1x16x16x8xbf16, #tpu.memory_space<vmem>>, %arg3: memref<8x8xbf16, #tpu.memory_space<vmem>>, %arg4: memref<1x8xf32, #tpu.memory_space<vmem>>, %arg5: memref<1x16x16x4xbf16, #tpu.memory_space<vmem>>) attributes {dimension_semantics = [#tpu.dimension_semantics<parallel>, #tpu.dimension_semantics<parallel>], iteration_bounds = array<i64: 1, 1>, scalar_prefetch = 0 : i64, scratch_operands = 0 : i64, tpu.core_type = #tpu.core_type<tc>, window_params = [{transform_indices = @transform_0, window_bounds = array<i64: 1, 16, 16, 8>}, {pipeline_mode = #tpu.pipeline_mode<synchronous>, transform_indices = @transform_1, window_bounds = array<i64: 8, 8>}, {pipeline_mode = #tpu.pipeline_mode<synchronous>, transform_indices = @transform_2, window_bounds = array<i64: 1, 8>}, {transform_indices = @transform_3, window_bounds = array<i64: 1, 16, 16, 4>}]} {
    %c0 = arith.constant 0 : index
    %c0_0 = arith.constant 0 : index
    %c0_1 = arith.constant 0 : index
    %c0_2 = arith.constant 0 : index
    %0 = vector.load %arg2[%c0, %c0_0, %c0_1, %c0_2] : memref<1x16x16x8xbf16, #tpu.memory_space<vmem>>, vector<1x16x16x8xbf16>
    %1 = vector.shape_cast %0 : vector<1x16x16x8xbf16> to vector<16x16x8xbf16>
    %2 = vector.shape_cast %1 : vector<16x16x8xbf16> to vector<256x8xbf16>
    %c0_3 = arith.constant 0 : index
    %c0_4 = arith.constant 0 : index
    %3 = vector.load %arg3[%c0_3, %c0_4] : memref<8x8xbf16, #tpu.memory_space<vmem>>, vector<8x8xbf16>
    %cst = arith.constant dense<0.000000e+00> : vector<256x8xf32>
    %4 = tpu.matmul %2, %3, %cst {dimension_numbers = #tpu.dot_dimension_numbers<[1], [0], [0], [1], [0, 0, 1, 1], [], []>} : vector<256x8xbf16>, vector<8x8xbf16>, vector<256x8xf32> -> vector<256x8xf32>
    %c0_5 = arith.constant 0 : index
    %c0_6 = arith.constant 0 : index
    %5 = vector.load %arg4[%c0_5, %c0_6] : memref<1x8xf32, #tpu.memory_space<vmem>>, vector<1x8xf32>
    %6 = vector.broadcast %5 : vector<1x8xf32> to vector<256x8xf32>
    %7 = arith.addf %4, %6 : vector<256x8xf32>
    %8 = vector.extract_strided_slice %7 {offsets = [0, 0], sizes = [256, 4], strides = [1, 1]} : vector<256x8xf32> to vector<256x4xf32>
    %9 = vector.extract_strided_slice %7 {offsets = [0, 4], sizes = [256, 4], strides = [1, 1]} : vector<256x8xf32> to vector<256x4xf32>
    %10 = arith.maximumf %8, %9 : vector<256x4xf32>
    %11 = vector.shape_cast %10 : vector<256x4xf32> to vector<16x16x4xf32>
    %12 = arith.truncf %11 : vector<16x16x4xf32> to vector<16x16x4xbf16>
    %c0_7 = arith.constant 0 : index
    %c0_8 = arith.constant 0 : index
    %c0_9 = arith.constant 0 : index
    %c0_10 = arith.constant 0 : index
    %13 = vector.load %arg5[%c0_7, %c0_8, %c0_9, %c0_10] : memref<1x16x16x4xbf16, #tpu.memory_space<vmem>>, vector<1x16x16x4xbf16>
    %14 = vector.shape_cast %13 : vector<1x16x16x4xbf16> to vector<16x16x4xbf16>
    %15 = vector.shape_cast %12 : vector<16x16x4xbf16> to vector<1x16x16x4xbf16>
    tpu.vector_store %arg5[%c0_7, %c0_8, %c0_9, %c0_10], %15 {strides = array<i32>} : memref<1x16x16x4xbf16, #tpu.memory_space<vmem>>, vector<1x16x16x4xbf16>,
    return
  }
  func.func @transform_0(%arg0: i32, %arg1: i32) -> (i32, i32, i32, i32) {
    %c0_i32 = arith.constant 0 : i32
    %c0_i32_0 = arith.constant 0 : i32
    %c0_i32_1 = arith.constant 0 : i32
    return %arg0, %arg1, %c0_i32, %c0_i32_0 : i32, i32, i32, i32
  }
  func.func @transform_1(%arg0: i32, %arg1: i32) -> (i32, i32) {
    %c0_i32 = arith.constant 0 : i32
    %c0_i32_0 = arith.constant 0 : i32
    %c0_i32_1 = arith.constant 0 : i32
    return %c0_i32, %c0_i32_0 : i32, i32
  }
  func.func @transform_2(%arg0: i32, %arg1: i32) -> (i32, i32) {
    %c0_i32 = arith.constant 0 : i32
    %c0_i32_0 = arith.constant 0 : i32
    %c0_i32_1 = arith.constant 0 : i32
    return %c0_i32, %c0_i32_0 : i32, i32
  }
  func.func @transform_3(%arg0: i32, %arg1: i32) -> (i32, i32, i32, i32) {
    %c0_i32 = arith.constant 0 : i32
    %c0_i32_0 = arith.constant 0 : i32
    %c0_i32_1 = arith.constant 0 : i32
    return %arg0, %arg1, %c0_i32, %c0_i32_0 : i32, i32, i32, i32
  }
}

</mosaic_0001>

<llo_original>
// kernel: tpu_custom_call.1
$region0: #{tpu_custom_call.1}
  #allocation0 [shape = 'u32[]', space=smem, size = 0x4, offset = 0x4, fixed_abs, tag = 'smem constant byte address 0x4 - core index']
  #allocation1 [shape = 'u32[144,128]{1,0:T(1,128)}', space=vmem, size = 0x12000, scoped, tag = 'internal scratch']
  %s0 = inlined_call_operand.vmem [shape: bf16[1,16,16,8], index: 0, kind: input, shape index: {}]
  %s1 = inlined_call_operand.vmem [shape: bf16[8,8], index: 1, kind: input, shape index: {}]
  %s2 = inlined_call_operand.vmem [shape: f32[1,8], index: 2, kind: input, shape index: {}]
  %s3 = inlined_call_operand.vmem [shape: bf16[1,16,16,4], index: 3, kind: output, shape index: {}]
  %s4 = sld [smem:[#allocation0]]
  $region22: #{tpu_custom_call.1} parent=0
    _
  %s6 = ssub.s32 1, %s4
  %s7 = scalar_select 0, %s6, %s4
  // Predicated region
  $region2: #{tpu_custom_call.1} parent=0 // pred_check
    _
  $region3: #{tpu_custom_call.1} parent=0 // pred_check_branch
    %9 = sbr.rel (0) target = $region5
  $region4: #{tpu_custom_call.1} parent=0 // pred_region
    _
  $region5: #{tpu_custom_call.1} parent=0 // pred_fallthru
    _
  // Predicated region
  $region6: #{tpu_custom_call.1} parent=0 // pred_check
    _
  $region7: #{tpu_custom_call.1} parent=0 // pred_check_branch
    %11 = sbr.rel (0) target = $region9
  $region8: #{tpu_custom_call.1} parent=0 // pred_region
    _
  $region9: #{tpu_custom_call.1} parent=0 // pred_fallthru
    _
  // Predicated region
  $region10: #{tpu_custom_call.1} parent=0 // pred_check
    _
  $region11: #{tpu_custom_call.1} parent=0 // pred_check_branch
    %13 = sbr.rel (0) target = $region13
  $region12: #{tpu_custom_call.1} parent=0 // pred_region
    _
  $region13: #{tpu_custom_call.1} parent=0 // pred_fallthru
    _
  %v15 = vld [vmem:[%s0] sm:$0xf]
  %v16 = vld [vmem:[%s0 + $0x4] sm:$0xf]
  %v17 = vld [vmem:[%s0 + $0x8] sm:$0xf]
  %v18 = vld [vmem:[%s0 + $0xc] sm:$0xf]
  %v19 = vld [vmem:[%s0 + $0x10] sm:$0xf]
  %v20 = vld [vmem:[%s0 + $0x14] sm:$0xf]
  %v21 = vld [vmem:[%s0 + $0x18] sm:$0xf]
  %v22 = vld [vmem:[%s0 + $0x1c] sm:$0xf]
  %v23 = vld [vmem:[%s0 + $0x20] sm:$0xf]
  %v24 = vld [vmem:[%s0 + $0x24] sm:$0xf]
  %v25 = vld [vmem:[%s0 + $0x28] sm:$0xf]
  %v26 = vld [vmem:[%s0 + $0x2c] sm:$0xf]
  %v27 = vld [vmem:[%s0 + $0x30] sm:$0xf]
  %v28 = vld [vmem:[%s0 + $0x34] sm:$0xf]
  %v29 = vld [vmem:[%s0 + $0x38] sm:$0xf]
  %v30 = vld [vmem:[%s0 + $0x3c] sm:$0xf]
  %v31 = vld [vmem:[%s0 + $0x40] sm:$0xf]
  %v32 = vld [vmem:[%s0 + $0x44] sm:$0xf]
  %v33 = vld [vmem:[%s0 + $0x48] sm:$0xf]
  %v34 = vld [vmem:[%s0 + $0x4c] sm:$0xf]
  %v35 = vld [vmem:[%s0 + $0x50] sm:$0xf]
  %v36 = vld [vmem:[%s0 + $0x54] sm:$0xf]
  %v37 = vld [vmem:[%s0 + $0x58] sm:$0xf]
  %v38 = vld [vmem:[%s0 + $0x5c] sm:$0xf]
  %v39 = vld [vmem:[%s0 + $0x60] sm:$0xf]
  %v40 = vld [vmem:[%s0 + $0x64] sm:$0xf]
  %v41 = vld [vmem:[%s0 + $0x68] sm:$0xf]
  %v42 = vld [vmem:[%s0 + $0x6c] sm:$0xf]
  %v43 = vld [vmem:[%s0 + $0x70] sm:$0xf]
  %v44 = vld [vmem:[%s0 + $0x74] sm:$0xf]
  %v45 = vld [vmem:[%s0 + $0x78] sm:$0xf]
  %v46 = vld [vmem:[%s0 + $0x7c] sm:$0xf]
  %v47 = vld [vmem:[%s1] sm:$0xf]
  %v48 = vld [vmem:[%s2] sm:$0x1]
  %v50 = vlaneseq
  %v51 = vshrl.u32 %v50, 7
  %v52 = vsub.s32 0, %v51
  %v53 = vrot.slane %v48, %v52
  %v87 = vunpack.c.l.b16 %v15
  %v88 = vunpack.c.l.b16 %v16
  %v89 = vunpack.c.l.b16 %v17
  %v90 = vunpack.c.l.b16 %v18
  %v91 = vunpack.c.l.b16 %v19
  %v92 = vunpack.c.l.b16 %v20
  %v93 = vunpack.c.l.b16 %v21
  %v94 = vunpack.c.l.b16 %v22
  %v95 = vunpack.c.l.b16 %v23
  %v96 = vunpack.c.l.b16 %v24
  %v97 = vunpack.c.l.b16 %v25
  %v98 = vunpack.c.l.b16 %v26
  %v99 = vunpack.c.l.b16 %v27
  %v100 = vunpack.c.l.b16 %v28
  %v101 = vunpack.c.l.b16 %v29
  %v102 = vunpack.c.l.b16 %v30
  %v103 = vunpack.c.l.b16 %v31
  %v104 = vunpack.c.l.b16 %v32
  %v105 = vunpack.c.l.b16 %v33
  %v106 = vunpack.c.l.b16 %v34
  %v107 = vunpack.c.l.b16 %v35
  %v108 = vunpack.c.l.b16 %v36
  %v109 = vunpack.c.l.b16 %v37
  %v110 = vunpack.c.l.b16 %v38
  %v111 = vunpack.c.l.b16 %v39
  %v112 = vunpack.c.l.b16 %v40
  %v113 = vunpack.c.l.b16 %v41
  %v114 = vunpack.c.l.b16 %v42
  %v115 = vunpack.c.l.b16 %v43
  %v116 = vunpack.c.l.b16 %v44
  %v117 = vunpack.c.l.b16 %v45
  %v118 = vunpack.c.l.b16 %v46
  %v119 = vpack.c.b16 %v88, %v87
  %v120 = vpack.c.b16 %v90, %v89
  %v121 = vpack.c.b16 %v92, %v91
  %v122 = vpack.c.b16 %v94, %v93
  %v123 = vpack.c.b16 %v96, %v95
  %v124 = vpack.c.b16 %v98, %v97
  %v125 = vpack.c.b16 %v100, %v99
  %v126 = vpack.c.b16 %v102, %v101
  %v127 = vpack.c.b16 %v104, %v103
  %v128 = vpack.c.b16 %v106, %v105
  %v129 = vpack.c.b16 %v108, %v107
  %v130 = vpack.c.b16 %v110, %v109
  %v131 = vpack.c.b16 %v112, %v111
  %v132 = vpack.c.b16 %v114, %v113
  %v133 = vpack.c.b16 %v116, %v115
  %v134 = vpack.c.b16 %v118, %v117
  %vm135 = vcmask 64512
  %v137 = vsel %vm135, %v119, 0
  %v140 = vsel %vm135, %v120, 0
  %v143 = vsel %vm135, %v121, 0
  %v146 = vsel %vm135, %v122, 0
  %v149 = vsel %vm135, %v123, 0
  %v152 = vsel %vm135, %v124, 0
  %v155 = vsel %vm135, %v125, 0
  %v158 = vsel %vm135, %v126, 0
  %v161 = vsel %vm135, %v127, 0
  %v164 = vsel %vm135, %v128, 0
  %v167 = vsel %vm135, %v129, 0
  %v170 = vsel %vm135, %v130, 0
  %v173 = vsel %vm135, %v131, 0
  %v176 = vsel %vm135, %v132, 0
  %v179 = vsel %vm135, %v133, 0
  %v182 = vsel %vm135, %v134, 0
  %vm184 = vcmask 1043456
  %v186 = vsel %vm184, %v47, 0
  %188 = vmatprep.subr.bf16.mxu0 0
  %189 = vmatpush1.bf16.msra.mxu0 %v186
  %190 = vmatprep.subr.bf16.mxu0 0
  %191 = vmatpush1.bf16.msra.mxu0 0
  %192 = vmatprep.subr.bf16.mxu0 0
  %193 = vmatpush1.bf16.msra.mxu0 0
  %194 = vmatprep.subr.bf16.mxu0 0
  %195 = vmatpush1.bf16.msra.mxu0 0
  %196 = vmatprep.subr.bf16.mxu0 0
  %197 = vmatpush1.bf16.msra.mxu0 0
  %198 = vmatprep.subr.bf16.mxu0 0
  %199 = vmatpush1.bf16.msra.mxu0 0
  %200 = vmatprep.subr.bf16.mxu0 0
  %201 = vmatpush1.bf16.msra.mxu0 0
  %202 = vmatprep.subr.bf16.mxu0 0
  %203 = vmatpush1.bf16.msra.mxu0 0
  %204 = vmatprep.subr.bf16.mxu0 0
  %205 = vmatpush1.bf16.msra.mxu0 0
  %206 = vmatprep.subr.bf16.mxu0 0
  %207 = vmatpush1.bf16.msra.mxu0 0
  %208 = vmatprep.subr.bf16.mxu0 0
  %209 = vmatpush1.bf16.msra.mxu0 0
  %210 = vmatprep.subr.bf16.mxu0 0
  %211 = vmatpush1.bf16.msra.mxu0 0
  %212 = vmatprep.subr.bf16.mxu0 0
  %213 = vmatpush1.bf16.msra.mxu0 0
  %214 = vmatprep.subr.bf16.mxu0 0
  %215 = vmatpush1.bf16.msra.mxu0 0
  %216 = vmatprep.subr.bf16.mxu0 0
  %217 = vmatpush1.bf16.msra.mxu0 0
  %218 = vmatprep.subr.bf16.mxu0 0
  %219 = vmatpush1.bf16.msra.mxu0 0
  %220 = vmatprep.mubr.bf16.mxu0 0
  %221 = vmatmul.mubr.bf16.gmra.mrb[0].mxu0 %v137
  %v222 = vpop.f32.mrb[0].mxu0
  %v223 = vadd.f32 %v53, %v222
  %v224 = vpop.f32.mrb[0].mxu0
  %v225 = vpop.f32.mrb[0].mxu0
  %v226 = vadd.f32 %v53, %v225
  %v227 = vpop.f32.mrb[0].mxu0
  %228 = vmatprep.mubr.bf16.mxu0 0
  %229 = vmatmul.mubr.bf16.gmra.mrb[0].mxu0 %v140
  %v230 = vpop.f32.mrb[0].mxu0
  %v231 = vadd.f32 %v53, %v230
  %v232 = vpop.f32.mrb[0].mxu0
  %v233 = vpop.f32.mrb[0].mxu0
  %v234 = vadd.f32 %v53, %v233
  %v235 = vpop.f32.mrb[0].mxu0
  %236 = vmatprep.mubr.bf16.mxu0 0
  %237 = vmatmul.mubr.bf16.gmra.mrb[0].mxu0 %v143
  %v238 = vpop.f32.mrb[0].mxu0
  %v239 = vadd.f32 %v53, %v238
  %v240 = vpop.f32.mrb[0].mxu0
  %v241 = vpop.f32.mrb[0].mxu0
  %v242 = vadd.f32 %v53, %v241
  %v243 = vpop.f32.mrb[0].mxu0
  %244 = vmatprep.mubr.bf16.mxu0 0
  %245 = vmatmul.mubr.bf16.gmra.mrb[0].mxu0 %v146
  %v246 = vpop.f32.mrb[0].mxu0
  %v247 = vadd.f32 %v53, %v246
  %v248 = vpop.f32.mrb[0].mxu0
  %v249 = vpop.f32.mrb[0].mxu0
  %v250 = vadd.f32 %v53, %v249
  %v251 = vpop.f32.mrb[0].mxu0
  %252 = vmatprep.mubr.bf16.mxu0 0
  %253 = vmatmul.mubr.bf16.gmra.mrb[0].mxu0 %v149
  %v254 = vpop.f32.mrb[0].mxu0
  %v255 = vadd.f32 %v53, %v254
  %v256 = vpop.f32.mrb[0].mxu0
  %v257 = vpop.f32.mrb[0].mxu0
  %v258 = vadd.f32 %v53, %v257
  %v259 = vpop.f32.mrb[0].mxu0
  %260 = vmatprep.mubr.bf16.mxu0 0
  %261 = vmatmul.mubr.bf16.gmra.mrb[0].mxu0 %v152
  %v262 = vpop.f32.mrb[0].mxu0
  %v263 = vadd.f32 %v53, %v262
  %v264 = vpop.f32.mrb[0].mxu0
  %v265 = vpop.f32.mrb[0].mxu0
  %v266 = vadd.f32 %v53, %v265
  %v267 = vpop.f32.mrb[0].mxu0
  %268 = vmatprep.mubr.bf16.mxu0 0
  %269 = vmatmul.mubr.bf16.gmra.mrb[0].mxu0 %v155
  %v270 = vpop.f32.mrb[0].mxu0
  %v271 = vadd.f32 %v53, %v270
  %v272 = vpop.f32.mrb[0].mxu0
  %v273 = vpop.f32.mrb[0].mxu0
  %v274 = vadd.f32 %v53, %v273
  %v275 = vpop.f32.mrb[0].mxu0
  %276 = vmatprep.mubr.bf16.mxu0 0
  %277 = vmatmul.mubr.bf16.gmra.mrb[0].mxu0 %v158
  %v278 = vpop.f32.mrb[0].mxu0
  %v279 = vadd.f32 %v53, %v278
  %v280 = vpop.f32.mrb[0].mxu0
  %v281 = vpop.f32.mrb[0].mxu0
  %v282 = vadd.f32 %v53, %v281
  %v283 = vpop.f32.mrb[0].mxu0
  %284 = vmatprep.mubr.bf16.mxu0 0
  %285 = vmatmul.mubr.bf16.gmra.mrb[0].mxu0 %v161
  %v286 = vpop.f32.mrb[0].mxu0
  %v287 = vadd.f32 %v53, %v286
  %v288 = vpop.f32.mrb[0].mxu0
  %v289 = vpop.f32.mrb[0].mxu0
  %v290 = vadd.f32 %v53, %v289
  %v291 = vpop.f32.mrb[0].mxu0
  %292 = vmatprep.mubr.bf16.mxu0 0
  %293 = vmatmul.mubr.bf16.gmra.mrb[0].mxu0 %v164
  %v294 = vpop.f32.mrb[0].mxu0
  %v295 = vadd.f32 %v53, %v294
  %v296 = vpop.f32.mrb[0].mxu0
  %v297 = vpop.f32.mrb[0].mxu0
  %v298 = vadd.f32 %v53, %v297
  %v299 = vpop.f32.mrb[0].mxu0
  %300 = vmatprep.mubr.bf16.mxu0 0
  %301 = vmatmul.mubr.bf16.gmra.mrb[0].mxu0 %v167
  %v302 = vpop.f32.mrb[0].mxu0
  %v303 = vadd.f32 %v53, %v302
  %v304 = vpop.f32.mrb[0].mxu0
  %v305 = vpop.f32.mrb[0].mxu0
  %v306 = vadd.f32 %v53, %v305
  %v307 = vpop.f32.mrb[0].mxu0
  %308 = vmatprep.mubr.bf16.mxu0 0
  %309 = vmatmul.mubr.bf16.gmra.mrb[0].mxu0 %v170
  %v310 = vpop.f32.mrb[0].mxu0
  %v311 = vadd.f32 %v53, %v310
  %v312 = vpop.f32.mrb[0].mxu0
  %v313 = vpop.f32.mrb[0].mxu0
  %v314 = vadd.f32 %v53, %v313
  %v315 = vpop.f32.mrb[0].mxu0
  %316 = vmatprep.mubr.bf16.mxu0 0
  %317 = vmatmul.mubr.bf16.gmra.mrb[0].mxu0 %v173
  %v318 = vpop.f32.mrb[0].mxu0
  %v319 = vadd.f32 %v53, %v318
  %v320 = vpop.f32.mrb[0].mxu0
  %v321 = vpop.f32.mrb[0].mxu0
  %v322 = vadd.f32 %v53, %v321
  %v323 = vpop.f32.mrb[0].mxu0
  %324 = vmatprep.mubr.bf16.mxu0 0
  %325 = vmatmul.mubr.bf16.gmra.mrb[0].mxu0 %v176
  %v326 = vpop.f32.mrb[0].mxu0
  %v327 = vadd.f32 %v53, %v326
  %v328 = vpop.f32.mrb[0].mxu0
  %v329 = vpop.f32.mrb[0].mxu0
  %v330 = vadd.f32 %v53, %v329
  %v331 = vpop.f32.mrb[0].mxu0
  %332 = vmatprep.mubr.bf16.mxu0 0
  %333 = vmatmul.mubr.bf16.gmra.mrb[0].mxu0 %v179
  %v334 = vpop.f32.mrb[0].mxu0
  %v335 = vadd.f32 %v53, %v334
  %v336 = vpop.f32.mrb[0].mxu0
  %v337 = vpop.f32.mrb[0].mxu0
  %v338 = vadd.f32 %v53, %v337
  %v339 = vpop.f32.mrb[0].mxu0
  %340 = vmatprep.mubr.bf16.mxu0 0
  %341 = vmatmul.mubr.bf16.gmra.mrb[0].mxu0 %v182
  %v342 = vpop.f32.mrb[0].mxu0
  %v343 = vadd.f32 %v53, %v342
  %v344 = vpop.f32.mrb[0].mxu0
  %v345 = vpop.f32.mrb[0].mxu0
  %v346 = vadd.f32 %v53, %v345
  %v347 = vpop.f32.mrb[0].mxu0
  %348 = vdwg.mxu0
  %381 = vrot.lane.b32.xlu0 %v223, 124
  %v382 = vpop.permute.xlu0 %381
  %383 = vrot.lane.b32.xlu0 %v226, 124
  %v384 = vpop.permute.xlu0 %383
  %385 = vrot.lane.b32.xlu0 %v231, 124
  %v386 = vpop.permute.xlu0 %385
  %387 = vrot.lane.b32.xlu0 %v234, 124
  %v388 = vpop.permute.xlu0 %387
  %389 = vrot.lane.b32.xlu0 %v239, 124
  %v390 = vpop.permute.xlu0 %389
  %391 = vrot.lane.b32.xlu0 %v242, 124
  %v392 = vpop.permute.xlu0 %391
  %393 = vrot.lane.b32.xlu0 %v247, 124
  %v394 = vpop.permute.xlu0 %393
  %395 = vrot.lane.b32.xlu0 %v250, 124
  %v396 = vpop.permute.xlu0 %395
  %397 = vrot.lane.b32.xlu0 %v255, 124
  %v398 = vpop.permute.xlu0 %397
  %399 = vrot.lane.b32.xlu0 %v258, 124
  %v400 = vpop.permute.xlu0 %399
  %401 = vrot.lane.b32.xlu0 %v263, 124
  %v402 = vpop.permute.xlu0 %401
  %403 = vrot.lane.b32.xlu0 %v266, 124
  %v404 = vpop.permute.xlu0 %403
  %405 = vrot.lane.b32.xlu0 %v271, 124
  %v406 = vpop.permute.xlu0 %405
  %407 = vrot.lane.b32.xlu0 %v274, 124
  %v408 = vpop.permute.xlu0 %407
  %409 = vrot.lane.b32.xlu0 %v279, 124
  %v410 = vpop.permute.xlu0 %409
  %411 = vrot.lane.b32.xlu0 %v282, 124
  %v412 = vpop.permute.xlu0 %411
  %413 = vrot.lane.b32.xlu0 %v287, 124
  %v414 = vpop.permute.xlu0 %413
  %415 = vrot.lane.b32.xlu0 %v290, 124
  %v416 = vpop.permute.xlu0 %415
  %417 = vrot.lane.b32.xlu0 %v295, 124
  %v418 = vpop.permute.xlu0 %417
  %419 = vrot.lane.b32.xlu0 %v298, 124
  %v420 = vpop.permute.xlu0 %419
  %421 = vrot.lane.b32.xlu0 %v303, 124
  %v422 = vpop.permute.xlu0 %421
  %423 = vrot.lane.b32.xlu0 %v306, 124
  %v424 = vpop.permute.xlu0 %423
  %425 = vrot.lane.b32.xlu0 %v311, 124
  %v426 = vpop.permute.xlu0 %425
  %427 = vrot.lane.b32.xlu0 %v314, 124
  %v428 = vpop.permute.xlu0 %427
  %429 = vrot.lane.b32.xlu0 %v319, 124
  %v430 = vpop.permute.xlu0 %429
  %431 = vrot.lane.b32.xlu0 %v322, 124
  %v432 = vpop.permute.xlu0 %431
  %433 = vrot.lane.b32.xlu0 %v327, 124
  %v434 = vpop.permute.xlu0 %433
  %435 = vrot.lane.b32.xlu0 %v330, 124
  %v436 = vpop.permute.xlu0 %435
  %437 = vrot.lane.b32.xlu0 %v335, 124
  %v438 = vpop.permute.xlu0 %437
  %439 = vrot.lane.b32.xlu0 %v338, 124
  %v440 = vpop.permute.xlu0 %439
  %441 = vrot.lane.b32.xlu0 %v343, 124
  %v442 = vpop.permute.xlu0 %441
  %443 = vrot.lane.b32.xlu0 %v346, 124
  %v444 = vpop.permute.xlu0 %443
  %v477 = vmax.f32 %v223, %v382
  %v478 = vmax.f32 %v226, %v384
  %v479 = vmax.f32 %v231, %v386
  %v480 = vmax.f32 %v234, %v388
  %v481 = vmax.f32 %v239, %v390
  %v482 = vmax.f32 %v242, %v392
  %v483 = vmax.f32 %v247, %v394
  %v484 = vmax.f32 %v250, %v396
  %v485 = vmax.f32 %v255, %v398
  %v486 = vmax.f32 %v258, %v400
  %v487 = vmax.f32 %v263, %v402
  %v488 = vmax.f32 %v266, %v404
  %v489 = vmax.f32 %v271, %v406
  %v490 = vmax.f32 %v274, %v408
  %v491 = vmax.f32 %v279, %v410
  %v492 = vmax.f32 %v282, %v412
  %v493 = vmax.f32 %v287, %v414
  %v494 = vmax.f32 %v290, %v416
  %v495 = vmax.f32 %v295, %v418
  %v496 = vmax.f32 %v298, %v420
  %v497 = vmax.f32 %v303, %v422
  %v498 = vmax.f32 %v306, %v424
  %v499 = vmax.f32 %v311, %v426
  %v500 = vmax.f32 %v314, %v428
  %v501 = vmax.f32 %v319, %v430
  %v502 = vmax.f32 %v322, %v432
  %v503 = vmax.f32 %v327, %v434
  %v504 = vmax.f32 %v330, %v436
  %v505 = vmax.f32 %v335, %v438
  %v506 = vmax.f32 %v338, %v440
  %v507 = vmax.f32 %v343, %v442
  %v508 = vmax.f32 %v346, %v444
  %v509 = vpack.c.bf16 %v478, %v477
  %v510 = vpack.c.bf16 %v480, %v479
  %v511 = vpack.c.bf16 %v482, %v481
  %v512 = vpack.c.bf16 %v484, %v483
  %v513 = vpack.c.bf16 %v486, %v485
  %v514 = vpack.c.bf16 %v488, %v487
  %v515 = vpack.c.bf16 %v490, %v489
  %v516 = vpack.c.bf16 %v492, %v491
  %v517 = vpack.c.bf16 %v494, %v493
  %v518 = vpack.c.bf16 %v496, %v495
  %v519 = vpack.c.bf16 %v498, %v497
  %v520 = vpack.c.bf16 %v500, %v499
  %v521 = vpack.c.bf16 %v502, %v501
  %v522 = vpack.c.bf16 %v504, %v503
  %v523 = vpack.c.bf16 %v506, %v505
  %v524 = vpack.c.bf16 %v508, %v507
  %v541 = vunpack.c.l.b16 %v509
  %v542 = vunpack.c.h.b16 %v509
  %v543 = vunpack.c.l.b16 %v510
  %v544 = vunpack.c.h.b16 %v510
  %v545 = vunpack.c.l.b16 %v511
  %v546 = vunpack.c.h.b16 %v511
  %v547 = vunpack.c.l.b16 %v512
  %v548 = vunpack.c.h.b16 %v512
  %v549 = vunpack.c.l.b16 %v513
  %v550 = vunpack.c.h.b16 %v513
  %v551 = vunpack.c.l.b16 %v514
  %v552 = vunpack.c.h.b16 %v514
  %v553 = vunpack.c.l.b16 %v515
  %v554 = vunpack.c.h.b16 %v515
  %v555 = vunpack.c.l.b16 %v516
  %v556 = vunpack.c.h.b16 %v516
  %v557 = vunpack.c.l.b16 %v517
  %v558 = vunpack.c.h.b16 %v517
  %v559 = vunpack.c.l.b16 %v518
  %v560 = vunpack.c.h.b16 %v518
  %v561 = vunpack.c.l.b16 %v519
  %v562 = vunpack.c.h.b16 %v519
  %v563 = vunpack.c.l.b16 %v520
  %v564 = vunpack.c.h.b16 %v520
  %v565 = vunpack.c.l.b16 %v521
  %v566 = vunpack.c.h.b16 %v521
  %v567 = vunpack.c.l.b16 %v522
  %v568 = vunpack.c.h.b16 %v522
  %v569 = vunpack.c.l.b16 %v523
  %v570 = vunpack.c.h.b16 %v523
  %v571 = vunpack.c.l.b16 %v524
  %v572 = vunpack.c.h.b16 %v524
  %v573 = vpack.c.b16 %v541, %v541
  %v574 = vpack.c.b16 %v542, %v542
  %v575 = vpack.c.b16 %v543, %v543
  %v576 = vpack.c.b16 %v544, %v544
  %v577 = vpack.c.b16 %v545, %v545
  %v578 = vpack.c.b16 %v546, %v546
  %v579 = vpack.c.b16 %v547, %v547
  %v580 = vpack.c.b16 %v548, %v548
  %v581 = vpack.c.b16 %v549, %v549
  %v582 = vpack.c.b16 %v550, %v550
  %v583 = vpack.c.b16 %v551, %v551
  %v584 = vpack.c.b16 %v552, %v552
  %v585 = vpack.c.b16 %v553, %v553
  %v586 = vpack.c.b16 %v554, %v554
  %v587 = vpack.c.b16 %v555, %v555
  %v588 = vpack.c.b16 %v556, %v556
  %v589 = vpack.c.b16 %v557, %v557
  %v590 = vpack.c.b16 %v558, %v558
  %v591 = vpack.c.b16 %v559, %v559
  %v592 = vpack.c.b16 %v560, %v560
  %v593 = vpack.c.b16 %v561, %v561
  %v594 = vpack.c.b16 %v562, %v562
  %v595 = vpack.c.b16 %v563, %v563
  %v596 = vpack.c.b16 %v564, %v564
  %v597 = vpack.c.b16 %v565, %v565
  %v598 = vpack.c.b16 %v566, %v566
  %v599 = vpack.c.b16 %v567, %v567
  %v600 = vpack.c.b16 %v568, %v568
  %v601 = vpack.c.b16 %v569, %v569
  %v602 = vpack.c.b16 %v570, %v570
  %v603 = vpack.c.b16 %v571, %v571
  %v604 = vpack.c.b16 %v572, %v572
  %vm637 = vcmask 27648
  %638 = vst.msk [vmem:[%s3] sm:$0xf] %vm637, %v573
  %639 = vst.msk [vmem:[%s3 + $0x4] sm:$0xf] %vm637, %v574
  %640 = vst.msk [vmem:[%s3 + $0x8] sm:$0xf] %vm637, %v575
  %641 = vst.msk [vmem:[%s3 + $0xc] sm:$0xf] %vm637, %v576
  %642 = vst.msk [vmem:[%s3 + $0x10] sm:$0xf] %vm637, %v577
  %643 = vst.msk [vmem:[%s3 + $0x14] sm:$0xf] %vm637, %v578
  %644 = vst.msk [vmem:[%s3 + $0x18] sm:$0xf] %vm637, %v579
  %645 = vst.msk [vmem:[%s3 + $0x1c] sm:$0xf] %vm637, %v580
  %646 = vst.msk [vmem:[%s3 + $0x20] sm:$0xf] %vm637, %v581
  %647 = vst.msk [vmem:[%s3 + $0x24] sm:$0xf] %vm637, %v582
  %648 = vst.msk [vmem:[%s3 + $0x28] sm:$0xf] %vm637, %v583
  %649 = vst.msk [vmem:[%s3 + $0x2c] sm:$0xf] %vm637, %v584
  %650 = vst.msk [vmem:[%s3 + $0x30] sm:$0xf] %vm637, %v585
  %651 = vst.msk [vmem:[%s3 + $0x34] sm:$0xf] %vm637, %v586
  %652 = vst.msk [vmem:[%s3 + $0x38] sm:$0xf] %vm637, %v587
  %653 = vst.msk [vmem:[%s3 + $0x3c] sm:$0xf] %vm637, %v588
  %654 = vst.msk [vmem:[%s3 + $0x40] sm:$0xf] %vm637, %v589
  %655 = vst.msk [vmem:[%s3 + $0x44] sm:$0xf] %vm637, %v590
  %656 = vst.msk [vmem:[%s3 + $0x48] sm:$0xf] %vm637, %v591
  %657 = vst.msk [vmem:[%s3 + $0x4c] sm:$0xf] %vm637, %v592
  %658 = vst.msk [vmem:[%s3 + $0x50] sm:$0xf] %vm637, %v593
  %659 = vst.msk [vmem:[%s3 + $0x54] sm:$0xf] %vm637, %v594
  %660 = vst.msk [vmem:[%s3 + $0x58] sm:$0xf] %vm637, %v595
  %661 = vst.msk [vmem:[%s3 + $0x5c] sm:$0xf] %vm637, %v596
  %662 = vst.msk [vmem:[%s3 + $0x60] sm:$0xf] %vm637, %v597
  %663 = vst.msk [vmem:[%s3 + $0x64] sm:$0xf] %vm637, %v598
  %664 = vst.msk [vmem:[%s3 + $0x68] sm:$0xf] %vm637, %v599
  %665 = vst.msk [vmem:[%s3 + $0x6c] sm:$0xf] %vm637, %v600
  %666 = vst.msk [vmem:[%s3 + $0x70] sm:$0xf] %vm637, %v601
  %667 = vst.msk [vmem:[%s3 + $0x74] sm:$0xf] %vm637, %v602
  %668 = vst.msk [vmem:[%s3 + $0x78] sm:$0xf] %vm637, %v603
  %669 = vst.msk [vmem:[%s3 + $0x7c] sm:$0xf] %vm637, %v604
  // Predicated region
  $region14: #{tpu_custom_call.1} parent=0 // pred_check
    _
  $region15: #{tpu_custom_call.1} parent=0 // pred_check_branch
    %671 = sbr.rel (0) target = $region17
  $region16: #{tpu_custom_call.1} parent=0 // pred_region
    _
  $region17: #{tpu_custom_call.1} parent=0 // pred_fallthru
    _
  // Predicated region
  $region18: #{tpu_custom_call.1} parent=0 // pred_check
    _
  $region19: #{tpu_custom_call.1} parent=0 // pred_check_branch
    %673 = sbr.rel (0) target = $region21
  $region20: #{tpu_custom_call.1} parent=0 // pred_region
    _
  $region21: #{tpu_custom_call.1} parent=0 // pred_fallthru
    _

</llo_original>
